<compile_context>
chip_gen: v7x
topology: tpu7x:2x2x1
jax: 0.10.0
libtpu: 0.0.40
codegen_flags: <defaults>
</compile_context>

<pallas_src>
import functools

import jax
import jax.numpy as jnp
from jax import lax
from jax.experimental import pallas as pl
from jax.experimental.pallas import tpu as pltpu

_MAX_BLOCK_LANES = 65536


def _round_up(v, m):
    return ((v + m - 1) // m) * m


def _vmem_capacity_bytes():
    try:
        info = pltpu.get_tpu_info()
        for name in ("vmem_capacity_bytes", "vmem_bytes", "vmem_size_bytes"):
            v = getattr(info, name, None)
            if v:
                return int(v)
    except Exception:
        pass
    return 64 * 1024 * 1024  # conservative (v7x-class) default


def _budgets():
    """(pipeline footprint budget, scoped VMEM limit) -- chip aware."""
    cap = _vmem_capacity_bytes()
    if cap >= 128 * 1024 * 1024:          # v5e / v6e (128 MiB VMEM)
        return 48 * 1024 * 1024, 96 * 1024 * 1024
    # v7x-class (64 MiB VMEM per core): keep headroom for Mosaic scratch.
    return 20 * 1024 * 1024, 40 * 1024 * 1024


def _choose_lane_tile(hw, n_ch, itemsize, n_streams, budget):
    """Largest lane tile whose double-buffered streamed footprint fits budget.

    Returns (tile_lanes, boundary_remainder).  remainder == 0 means no lane
    masking is needed anywhere (tile divides hw, or tile == hw full extent).
    """
    c_pad = _round_up(max(n_ch, 1), 8)
    per_lane = 2 * n_streams * c_pad * max(int(itemsize), 1)  # 2 = double buffer
    tl = budget // per_lane
    if tl >= hw:
        return hw, 0                       # full-extent block, single step
    tl = max(128, (tl // 128) * 128)
    tl = min(tl, _MAX_BLOCK_LANES)
    if tl >= hw:
        return hw, 0
    return tl, hw % tl


def _stats_kernel(x_ref, p_ref, *, n_half, tl, nb, rem):
    """Per-block centered partial moments.

    x_ref: (C, TL) block (real channels first, imag channels second).
    p_ref: (n_half, 8) partial row:
           [sum_r, sum_i, css_rr, css_ri, css_ii, 0, 0, 0]
           where css_* are sums of products centered on the *block* mean.
    """
    xr = x_ref[0:n_half, :].astype(jnp.float32)
    xi = x_ref[n_half:, :].astype(jnp.float32)

    def emit(xr, xi, inv_c, valid=None):
        sr = jnp.sum(xr, axis=-1, keepdims=True)
        si = jnp.sum(xi, axis=-1, keepdims=True)
        xrc = xr - sr * inv_c
        xic = xi - si * inv_c
        if valid is not None:
            xrc = jnp.where(valid, xrc, 0.0)
            xic = jnp.where(valid, xic, 0.0)
        ssrr = jnp.sum(xrc * xrc, axis=-1, keepdims=True)
        ssri = jnp.sum(xrc * xic, axis=-1, keepdims=True)
        ssii = jnp.sum(xic * xic, axis=-1, keepdims=True)
        p_ref[...] = jnp.concatenate(
            [sr, si, ssrr, ssri, ssii, jnp.zeros((n_half, 3), jnp.float32)],
            axis=-1)

    if rem == 0:
        # Tile divides H*W (or is full-extent): no masking anywhere.
        emit(xr, xi, 1.0 / tl)
    else:
        j = pl.program_id(1)
        is_last = j == nb - 1

        @pl.when(jnp.logical_not(is_last))
        def _():
            emit(xr, xi, 1.0 / tl)

        @pl.when(is_last)
        def _():
            lane = lax.broadcasted_iota(jnp.int32, xr.shape, 1)
            valid = lane < rem
            emit(jnp.where(valid, xr, 0.0), jnp.where(valid, xi, 0.0),
                 1.0 / rem, valid=valid)


def _apply_kernel(x_ref, c_ref, o_ref, *, n_half):
    """Elementwise 2x2 complex mix + bias on a (C, TL) block.

    c_ref: (n_half, 8) packed coefficients [Zrr, Zri, Zir, Zii, br', bi', 0, 0]
           with the mean already folded into the biases br'/bi'.
    """
    zrr = c_ref[:, 0:1]
    zri = c_ref[:, 1:2]
    zir = c_ref[:, 2:3]
    zii = c_ref[:, 3:4]
    br = c_ref[:, 4:5]
    bi = c_ref[:, 5:6]

    xr = x_ref[0:n_half, :].astype(jnp.float32)
    xi = x_ref[n_half:, :].astype(jnp.float32)

    o_ref[0:n_half, :] = (zrr * xr + zri * xi + br).astype(o_ref.dtype)
    o_ref[n_half:, :] = (zir * xr + zii * xi + bi).astype(o_ref.dtype)


def complex_batch_norm(x, Wrr, Wri, Wii, Br, Bi, *, eps=1e-5, complex_axis=1):
    """Training-mode ComplexBatchNorm forward over NCHW input."""
    assert complex_axis == 1, "NCHW with complex_axis=1 assumed"
    N, C, H, W = x.shape
    assert C % 2 == 0, "complex axis must split into real/imag halves"
    n_half = C // 2
    HW = H * W
    total = N * HW

    # Native-layout view: (N, C, H*W) is a free reshape of NCHW.
    x3 = x.reshape(N, C, HW)

    itemsize = jnp.dtype(x.dtype).itemsize
    pipe_budget, vmem_limit = _budgets()

    # ---- Pass 1: per-block centered partial moments --------------------
    tl1, rem1 = _choose_lane_tile(HW, C, itemsize, n_streams=1,
                                  budget=pipe_budget)
    nb1 = pl.cdiv(HW, tl1)

    partials = pl.pallas_call(
        functools.partial(_stats_kernel, n_half=n_half, tl=tl1, nb=nb1,
                          rem=rem1),
        out_shape=jax.ShapeDtypeStruct((N * nb1, n_half, 8), jnp.float32),
        grid=(N, nb1),
        in_specs=[pl.BlockSpec((None, C, tl1), lambda n, j: (n, 0, j))],
        out_specs=pl.BlockSpec((None, n_half, 8),
                               lambda n, j: (n * nb1 + j, 0, 0)),
        compiler_params=pltpu.CompilerParams(
            dimension_semantics=("parallel", "parallel"),
            vmem_limit_bytes=vmem_limit),
    )(x3)

    # ---- Exact merge of partials + coefficient build (plain JAX, O(C)) --
    counts = jnp.full((nb1,), float(tl1), jnp.float32)
    if rem1:
        counts = counts.at[-1].set(float(rem1))
    counts = jnp.tile(counts, (N,))[:, None]            # (N*nb1, 1)

    sr = partials[:, :, 0]
    si = partials[:, :, 1]
    ssrr = partials[:, :, 2]
    ssri = partials[:, :, 3]
    ssii = partials[:, :, 4]

    inv_total = 1.0 / float(total)
    Mr = jnp.sum(sr, axis=0) * inv_total
    Mi = jnp.sum(si, axis=0) * inv_total
    dr = sr / counts - Mr
    di = si / counts - Mi
    # Chan-style merge: sum of centered SS + count * (block mean - mean)^2.
    Vrr = jnp.sum(ssrr + counts * dr * dr, axis=0) * inv_total + eps
    Vri = jnp.sum(ssri + counts * dr * di, axis=0) * inv_total
    Vii = jnp.sum(ssii + counts * di * di, axis=0) * inv_total + eps

    tau = Vrr + Vii
    delta = Vrr * Vii - Vri * Vri
    s = jnp.sqrt(delta)
    t = jnp.sqrt(tau + 2.0 * s)
    rst = 1.0 / (s * t)
    Urr = (s + Vii) * rst
    Uii = (s + Vrr) * rst
    Uri = -Vri * rst

    Wrr32 = Wrr.astype(jnp.float32)
    Wri32 = Wri.astype(jnp.float32)
    Wii32 = Wii.astype(jnp.float32)
    Zrr = Wrr32 * Urr + Wri32 * Uri
    Zri = Wrr32 * Uri + Wri32 * Uii
    Zir = Wri32 * Urr + Wii32 * Uri
    Zii = Wri32 * Uri + Wii32 * Uii
    # Fold the mean subtraction into the bias.
    brp = Br.astype(jnp.float32) - Zrr * Mr - Zri * Mi
    bip = Bi.astype(jnp.float32) - Zir * Mr - Zii * Mi

    coeff = jnp.stack(
        [Zrr, Zri, Zir, Zii, brp, bip,
         jnp.zeros_like(Zrr), jnp.zeros_like(Zrr)], axis=1)   # (n_half, 8)

    # ---- Pass 2: elementwise whiten+affine in native layout -------------
    tl2, _ = _choose_lane_tile(HW, C, itemsize, n_streams=2,
                               budget=pipe_budget)
    nb2 = pl.cdiv(HW, tl2)

    y3 = pl.pallas_call(
        functools.partial(_apply_kernel, n_half=n_half),
        out_shape=jax.ShapeDtypeStruct((N, C, HW), x.dtype),
        grid=(N, nb2),
        in_specs=[pl.BlockSpec((None, C, tl2), lambda n, j: (n, 0, j)),
                  pl.BlockSpec((n_half, 8), lambda n, j: (0, 0))],
        out_specs=pl.BlockSpec((None, C, tl2), lambda n, j: (n, 0, j)),
        compiler_params=pltpu.CompilerParams(
            dimension_semantics=("parallel", "parallel"),
            vmem_limit_bytes=vmem_limit),
    )(x3, coeff)

    # TODO(synk): running-stat EMA updates (RMr/RMi/RVrr/RVri/RVii,
    # num_batches_tracked) and the eval-mode (use-running-stats) path are not
    # emitted; this implements the training-mode forward output only.
    return y3.reshape(N, C, H, W)


if __name__ == "__main__":
    key = jax.random.PRNGKey(0)
    kx, kw = jax.random.split(key)
    N, C, H, W = 2, 4, 16, 16
    n_half = C // 2
    eps = 1e-5

    x = jax.random.normal(kx, (N, C, H, W), dtype=jnp.float32)
    Wrr = jnp.ones((n_half,), jnp.float32)
    Wii = jnp.ones((n_half,), jnp.float32)
    Wri = jax.random.uniform(kw, (n_half,), jnp.float32, minval=-0.9, maxval=0.9)
    Br = jnp.zeros((n_half,), jnp.float32)
    Bi = jnp.zeros((n_half,), jnp.float32)

    out = jax.block_until_ready(
        complex_batch_norm(x, Wrr, Wri, Wii, Br, Bi, eps=eps))

    # Pure-JAX reference implementing the exact PyTorch training-mode math.
    xr, xi = x[:, :n_half], x[:, n_half:]
    red = (0, 2, 3)
    Mr = xr.mean(red, keepdims=True)
    Mi = xi.mean(red, keepdims=True)
    xrc, xic = xr - Mr, xi - Mi
    Vrr = (xrc * xrc).mean(red, keepdims=True) + eps
    Vri = (xrc * xic).mean(red, keepdims=True)
    Vii = (xic * xic).mean(red, keepdims=True) + eps
    tau = Vrr + Vii
    delta = Vrr * Vii - Vri * Vri
    s = jnp.sqrt(delta)
    t = jnp.sqrt(tau + 2.0 * s)
    rst = 1.0 / (s * t)
    Urr, Uii, Uri = (s + Vii) * rst, (s + Vrr) * rst, -Vri * rst
    vd = (1, n_half, 1, 1)
    Wrr_, Wri_, Wii_ = Wrr.reshape(vd), Wri.reshape(vd), Wii.reshape(vd)
    Zrr = Wrr_ * Urr + Wri_ * Uri
    Zri = Wrr_ * Uri + Wri_ * Uii
    Zir = Wri_ * Urr + Wii_ * Uri
    Zii = Wri_ * Uri + Wii_ * Uii
    yr = Zrr * xrc + Zri * xic + Br.reshape(vd)
    yi = Zir * xrc + Zii * xic + Bi.reshape(vd)
    ref = jnp.concatenate([yr, yi], axis=1)

    assert out.shape == x.shape and out.dtype == x.dtype
    max_err = float(jnp.max(jnp.abs(out - ref)))
    assert jnp.allclose(out, ref, atol=2e-4, rtol=2e-4), max_err
    print("KERNEL_OK")
</pallas_src>

<mosaic_0001>
module attributes {stable_mosaic.version = 11 : i64} {
  func.func @_stats_kernel(%arg0: i32, %arg1: i32, %arg2: memref<1x4x256xf32, #tpu.memory_space<vmem>>, %arg3: memref<1x2x8xf32, #tpu.memory_space<vmem>>) attributes {dimension_semantics = [#tpu.dimension_semantics<parallel>, #tpu.dimension_semantics<parallel>], iteration_bounds = array<i64: 2, 1>, scalar_prefetch = 0 : i64, scratch_operands = 0 : i64, tpu.core_type = #tpu.core_type<tc>, window_params = [{transform_indices = @transform_0, window_bounds = array<i64: 1, 4, 256>}, {transform_indices = @transform_1, window_bounds = array<i64: 1, 2, 8>}]} {
    %c0 = arith.constant 0 : index
    %c0_0 = arith.constant 0 : index
    %c0_1 = arith.constant 0 : index
    %0 = vector.load %arg2[%c0, %c0_0, %c0_1] : memref<1x4x256xf32, #tpu.memory_space<vmem>>, vector<1x2x256xf32>
    %1 = vector.shape_cast %0 : vector<1x2x256xf32> to vector<2x256xf32>
    %c0_2 = arith.constant 0 : index
    %c2 = arith.constant 2 : index
    %c0_3 = arith.constant 0 : index
    %2 = vector.load %arg2[%c0_2, %c2, %c0_3] : memref<1x4x256xf32, #tpu.memory_space<vmem>>, vector<1x2x256xf32>
    %3 = vector.shape_cast %2 : vector<1x2x256xf32> to vector<2x256xf32>
    %cst = arith.constant dense<0.000000e+00> : vector<2xf32>
    %4 = vector.multi_reduction <add>, %1, %cst [1] : vector<2x256xf32> to vector<2xf32>
    %5 = vector.shape_cast %4 : vector<2xf32> to vector<2x1xf32>
    %cst_4 = arith.constant dense<0.000000e+00> : vector<2xf32>
    %6 = vector.multi_reduction <add>, %3, %cst_4 [1] : vector<2x256xf32> to vector<2xf32>
    %7 = vector.shape_cast %6 : vector<2xf32> to vector<2x1xf32>
    %cst_5 = arith.constant 3.906250e-03 : f32
    %8 = vector.broadcast %cst_5 : f32 to vector<2x1xf32>
    %9 = arith.mulf %5, %8 : vector<2x1xf32>
    %10 = vector.broadcast %9 : vector<2x1xf32> to vector<2x256xf32>
    %11 = arith.subf %1, %10 : vector<2x256xf32>
    %cst_6 = arith.constant 3.906250e-03 : f32
    %12 = vector.broadcast %cst_6 : f32 to vector<2x1xf32>
    %13 = arith.mulf %7, %12 : vector<2x1xf32>
    %14 = vector.broadcast %13 : vector<2x1xf32> to vector<2x256xf32>
    %15 = arith.subf %3, %14 : vector<2x256xf32>
    %16 = arith.mulf %11, %11 : vector<2x256xf32>
    %cst_7 = arith.constant dense<0.000000e+00> : vector<2xf32>
    %17 = vector.multi_reduction <add>, %16, %cst_7 [1] : vector<2x256xf32> to vector<2xf32>
    %18 = vector.shape_cast %17 : vector<2xf32> to vector<2x1xf32>
    %19 = arith.mulf %11, %15 : vector<2x256xf32>
    %cst_8 = arith.constant dense<0.000000e+00> : vector<2xf32>
    %20 = vector.multi_reduction <add>, %19, %cst_8 [1] : vector<2x256xf32> to vector<2xf32>
    %21 = vector.shape_cast %20 : vector<2xf32> to vector<2x1xf32>
    %22 = arith.mulf %15, %15 : vector<2x256xf32>
    %cst_9 = arith.constant dense<0.000000e+00> : vector<2xf32>
    %23 = vector.multi_reduction <add>, %22, %cst_9 [1] : vector<2x256xf32> to vector<2xf32>
    %24 = vector.shape_cast %23 : vector<2xf32> to vector<2x1xf32>
    %cst_10 = arith.constant 0.000000e+00 : f32
    %25 = vector.broadcast %cst_10 : f32 to vector<2x3xf32>
    %26 = tpu.concatenate %5, %7, %18, %21, %24, %25 in 1 : vector<2x1xf32>, vector<2x1xf32>, vector<2x1xf32>, vector<2x1xf32>, vector<2x1xf32>, vector<2x3xf32> -> vector<2x8xf32>
    %c0_11 = arith.constant 0 : index
    %c0_12 = arith.constant 0 : index
    %c0_13 = arith.constant 0 : index
    %27 = vector.load %arg3[%c0_11, %c0_12, %c0_13] : memref<1x2x8xf32, #tpu.memory_space<vmem>>, vector<1x2x8xf32>
    %28 = vector.shape_cast %27 : vector<1x2x8xf32> to vector<2x8xf32>
    %29 = vector.shape_cast %26 : vector<2x8xf32> to vector<1x2x8xf32>
    tpu.vector_store %arg3[%c0_11, %c0_12, %c0_13], %29 {strides = array<i32>} : memref<1x2x8xf32, #tpu.memory_space<vmem>>, vector<1x2x8xf32>,
    return
  }
  func.func @transform_0(%arg0: i32, %arg1: i32) -> (i32, i32, i32) {
    %c0_i32 = arith.constant 0 : i32
    %c0_i32_0 = arith.constant 0 : i32
    return %arg0, %c0_i32, %arg1 : i32, i32, i32
  }
  func.func @transform_1(%arg0: i32, %arg1: i32) -> (i32, i32, i32) {
    %c1_i32 = arith.constant 1 : i32
    %0 = arith.muli %arg0, %c1_i32 : i32
    %1 = arith.addi %0, %arg1 : i32
    %c0_i32 = arith.constant 0 : i32
    %c0_i32_0 = arith.constant 0 : i32
    %c0_i32_1 = arith.constant 0 : i32
    return %1, %c0_i32, %c0_i32_0 : i32, i32, i32
  }
}

</mosaic_0001>

<llo_original>
// kernel: tpu_custom_call.1
$region0: #{tpu_custom_call.1}
  #allocation0 [shape = 'u32[]', space=smem, size = 0x4, offset = 0x4, fixed_abs, tag = 'smem constant byte address 0x4 - core index']
  #allocation1 [shape = 'u32[144,128]{1,0:T(1,128)}', space=vmem, size = 0x12000, scoped, tag = 'internal scratch']
  %s0 = inlined_call_operand.hbm [shape: f32[2,4,256], index: 0, kind: input, shape index: {}]
  %s1 = inlined_call_operand.hbm [shape: f32[2,2,8], index: 1, kind: output, shape index: {}]
  %s2 = sld [smem:[#allocation0]]
  $region41: #{tpu_custom_call.1} parent=0
    _
  %s4 = ssub.s32 1, %s2
  %s5 = scalar_select 0, %s4, %s2
  $region1: #{tpu_custom_call.1} parent=0
    #allocation2 [shape = 'u8[8192]{0}', space=vmem, size = 0x2000, scoped, tag = 'input window, operand 0']
    #allocation3 [shape = 's32[2]{0}', space=sflag, size = 0x8, scoped, tag = 'scoped memory for tpu_custom_call.1']
    #allocation4 [shape = 's32[2]{0}', space=sflag, size = 0x8, scoped, tag = 'scoped memory for tpu_custom_call.1']
    #allocation5 [shape = 'u8[2048]{0}', space=vmem, size = 0x800, scoped, tag = 'output window, operand 0']
    %6 = vsyncpa [#allocation3], 0
    %s7 = scalar_lea.sflag [#allocation3], 1
    %8 = vsyncpa %s7, 0
    %9 = vsyncpa [#allocation4], 0
    %s10 = scalar_lea.sflag [#allocation4], 1
    %11 = vsyncpa %s10, 0
    loop: start=0, step=1, limit=4
    $region2: #{tpu_custom_call.1} parent=1 // loop_pre_header
      _
    $region3: #{tpu_custom_call.1} parent=1 // loop_header
      %s13 = sphi 0, %s17
      %p14 = scmp.ge.s32.totalorder %s13, 4
      %s20 = sphi 0, %s32
      %s21 = sphi 0, %s28
      %s22 = sphi 0, %s20
      %s23 = sphi 0, %s21
      %s24 = sphi 0, %s22
      %s25 = sphi 0, %s23
      %s37 = sphi 0, %s39
      %s40 = sphi 0, %s37
      %s41 = sphi 0, %s40
      %s57 = sphi 0, %s41
      %s65 = sphi 0, %s67
      %s68 = sphi 0, %s65
      %s69 = sphi 0, %s68
      %s85 = sphi 0, %s69
    $region4: #{tpu_custom_call.1} parent=1 // loop_header_branch
      %16 = sbr.rel (%p14) target = $region8
    $region5: #{tpu_custom_call.1} parent=1 // loop_body
      %s18 = ssub.s32 %s13, 1
      %s19 = ssub.s32 %s13, 2
      %s26 = sadd.s32 1, %s21
      %p27 = scmp.ge.s32.totalorder %s26, 1
      %s28 = scalar_select %p27, 0, %s26
      %s29 = sadd.s32 1, %s20
      %s30 = scalar_select %p27, %s29, %s20
      %p31 = scmp.ge.s32.totalorder %s30, 2
      %s32 = scalar_select %p31, 0, %s30
      %s33 = ssub.s32 %s20, %s32
      %s34 = ssub.s32 %s21, %s28
      %s35 = sor.u32 %s33, %s34
      %p36 = scmp.eq.s32.totalorder %s35, 0
      %s38 = sadd.s32 %s37, 1
      %s39 = scalar_select %p36, %s37, %s38
      %p42 = pneg %p36
      %p43 = scmp.eq.s32.totalorder %s13, 1
      %p44 = por %p42, %p43
      %p45 = scmp.ne.s32.totalorder %s37, %s40
      %p46 = scmp.eq.s32.totalorder %s13, 0
      %p47 = por %p45, %p46
      %p48 = scmp.ne.s32.totalorder %s37, %s40
      %p49 = scmp.eq.s32.totalorder %s18, 1
      %p50 = por %p48, %p49
      %p51 = scmp.ne.s32.totalorder %s40, %s41
      %p52 = scmp.eq.s32.totalorder %s18, 0
      %p53 = por %p51, %p52
      %p54 = scmp.ne.s32.totalorder %s40, %s41
      %p55 = scmp.eq.s32.totalorder %s19, 1
      %p56 = por %p54, %p55
      %p58 = scmp.ne.s32.totalorder %s41, %s57
      %p59 = scmp.eq.s32.totalorder %s19, 0
      %p60 = por %p58, %p59
      %s61 = sadd.s32 %s20, %s21
      %s62 = sadd.s32 %s32, %s28
      %s63 = ssub.s32 %s61, %s62
      %p64 = scmp.eq.s32.totalorder %s63, 0
      %s66 = sadd.s32 %s65, 1
      %s67 = scalar_select %p64, %s65, %s66
      %p70 = pneg %p64
      %p71 = scmp.eq.s32.totalorder %s13, 1
      %p72 = por %p70, %p71
      %p73 = scmp.ne.s32.totalorder %s65, %s68
      %p74 = scmp.eq.s32.totalorder %s13, 0
      %p75 = por %p73, %p74
      %p76 = scmp.ne.s32.totalorder %s65, %s68
      %p77 = scmp.eq.s32.totalorder %s18, 1
      %p78 = por %p76, %p77
      %p79 = scmp.ne.s32.totalorder %s68, %s69
      %p80 = scmp.eq.s32.totalorder %s18, 0
      %p81 = por %p79, %p80
      %p82 = scmp.ne.s32.totalorder %s68, %s69
      %p83 = scmp.eq.s32.totalorder %s19, 1
      %p84 = por %p82, %p83
      %p86 = scmp.ne.s32.totalorder %s69, %s85
      %p87 = scmp.eq.s32.totalorder %s19, 0
      %p88 = por %p86, %p87
      %p89 = scmp.le.s32.totalorder 1, %s13
      %p90 = scmp.lt.s32.totalorder %s13, 3
      %p91 = pnand %p89, %p90
      %p92 = pneg %p91
      // Predicated region
      $region9: #{tpu_custom_call.1} parent=5 // pred_check
        _
      $region10: #{tpu_custom_call.1} parent=5 // pred_check_branch
        %94 = sbr.rel (%p91) target = $region12
      $region11: #{tpu_custom_call.1} parent=5 // pred_region
        %s95 = ssub.s32 %s13, 1
      $region12: #{tpu_custom_call.1} parent=5 // pred_fallthru
        _
      %p96 = scmp.lt.s32.totalorder %s13, 2
      // Predicated region
      $region13: #{tpu_custom_call.1} parent=5 // pred_check
        %p97 = pneg %p96
      $region14: #{tpu_custom_call.1} parent=5 // pred_check_branch
        %99 = sbr.rel (%p97) target = $region16
      $region15: #{tpu_custom_call.1} parent=5 // pred_region
        // Predicated region
        $region17: #{tpu_custom_call.1} parent=15 // pred_check
          %p100 = pneg %p47
        $region18: #{tpu_custom_call.1} parent=15 // pred_check_branch
          %102 = sbr.rel (%p100) target = $region20
        $region19: #{tpu_custom_call.1} parent=15 // pred_region
          %s103 = sand.u32 %s37, 1
          %s104 = scalar_lea.sflag [#allocation3], %s103
          %s105 = sand.u32 %s37, 1
          %s106 = smul.addr %s105, 8
          %s107 = scalar_lea.vmem [#allocation2], %s106
          %s108 = smul.u32 2, %s21
          %s110 = ssub.s32 128, 128
          %111 = vsyncadd %s104, %s110
          %s112 = smul.addr %s20, 2
          %s113 = sadd.s32 %s108, %s112
          %s114 = smul.addr %s113, 64
          %s115 = scalar_lea.hbm %s0, %s114
          %s117 = sshll.u32 %s107, 4
          %s118 = int_to_ptr.vmem [resolvable:$true] %s117
          %120 = dma.hbm_to_vmem [thread:$0]  %s115, 128, %s118, %s104
        $region20: #{tpu_custom_call.1} parent=15 // pred_fallthru
          _
      $region16: #{tpu_custom_call.1} parent=5 // pred_fallthru
        _
      %p121 = scmp.le.s32.totalorder 1, %s13
      %p122 = scmp.lt.s32.totalorder %s13, 3
      %p123 = pnand %p121, %p122
      %p124 = pneg %p123
      // Predicated region
      $region21: #{tpu_custom_call.1} parent=5 // pred_check
        _
      $region22: #{tpu_custom_call.1} parent=5 // pred_check_branch
        %126 = sbr.rel (%p123) target = $region24
      $region23: #{tpu_custom_call.1} parent=5 // pred_region
        %s127 = ssub.s32 %s13, 1
        %s128 = sand.u32 %s40, 1
        %s129 = scalar_lea.sflag [#allocation3], %s128
        %s130 = sand.u32 %s40, 1
        %s131 = smul.addr %s130, 8
        %s132 = scalar_lea.vmem [#allocation2], %s131
        // Predicated region
        $region25: #{tpu_custom_call.1} parent=23 // pred_check
          %p133 = pneg %p53
        $region26: #{tpu_custom_call.1} parent=23 // pred_check_branch
          %135 = sbr.rel (%p133) target = $region28
        $region27: #{tpu_custom_call.1} parent=23 // pred_region
          %136 = dma.done %s129, 128
        $region28: #{tpu_custom_call.1} parent=23 // pred_fallthru
          _
        %s137 = sand.u32 %s40, 1
        %s138 = scalar_lea.sflag [#allocation3], %s137
        %s139 = sand.u32 %s40, 1
        %s140 = smul.addr %s139, 8
        %s141 = scalar_lea.vmem [#allocation2], %s140
        %p142 = pneg %p53
        %p143 = pneg %p50
        %p144 = pneg %p81
        %p145 = pneg %p78
        %s146 = sand.u32 %s68, 1
        %s147 = scalar_lea.sflag [#allocation4], %s146
        %s148 = sand.u32 %s68, 1
        %s149 = smul.addr %s148, 2
        %s150 = scalar_lea.vmem [#allocation5], %s149
        %s151 = smul.u32 2, %s23
        %s152 = sadd.s32 %s22, %s23
        %v153 = vld [vmem:[%s132] sm:$0x33]
        %v154 = vld [vmem:[%s132] sm:$0xcc]
        %v156 = vcombine.high %v153, %v153
        %vm158 = vcmask 1041408
        %v159 = vsel %vm158, %v153, 0.0
        %v160 = vsel %vm158, %v156, 0.0
        %v161 = vadd.f32 %v159, %v160
        %162 = vadd.xlane.f32.xlu0 %v161
        %v163 = vpop.xlane.xlu0 %162
        %v165 = vcombine.high %v154, %v154
        %vm167 = vcmask 1043458
        %v168 = vsel %vm167, %v154, 0.0
        %v169 = vsel %vm167, %v165, 0.0
        %v170 = vadd.f32 %v168, %v169
        %171 = vadd.xlane.f32.xlu0 %v170
        %v172 = vpop.xlane.xlu0 %171
        %v173 = vmul.f32 %v163, 0.00390625
        %v176 = vunpack.c.l.s4 839922192
        %v177 = vunpack.c.0.s8 %v176
        %v178 = vlaneseq
        %v179 = vshrl.u32 %v178, 7
        %v180 = vsub.s32 %v177, %v179
        %v181 = vrot.slane %v173, %v180
        %v183 = vsub.f32 %v153, %v181
        %v184 = vmul.f32 %v172, 0.00390625
        %v187 = vunpack.c.l.s4 839922192
        %v188 = vunpack.c.0.s8 %v187
        %v189 = vlaneseq
        %v190 = vshrl.u32 %v189, 7
        %v191 = vsub.s32 %v188, %v190
        %v192 = vrot.slane %v184, %v191
        %v194 = vsub.f32 %v154, %v192
        %v195 = vmul.f32 %v183, %v183
        %v197 = vcombine.high %v195, %v195
        %v199 = vsel %vm158, %v195, 0.0
        %v200 = vsel %vm158, %v197, 0.0
        %v201 = vadd.f32 %v199, %v200
        %202 = vadd.xlane.f32.xlu0 %v201
        %v203 = vpop.xlane.xlu0 %202
        %v205 = vrot.slane %v194, 6
        %v206 = vrot.slane %v205, 4
        %v208 = vmul.f32 %v183, %v206
        %v210 = vcombine.high %v208, %v208
        %v212 = vsel %vm158, %v208, 0.0
        %v213 = vsel %vm158, %v210, 0.0
        %v214 = vadd.f32 %v212, %v213
        %215 = vadd.xlane.f32.xlu0 %v214
        %v216 = vpop.xlane.xlu0 %215
        %v217 = vmul.f32 %v194, %v194
        %v219 = vcombine.high %v217, %v217
        %v221 = vsel %vm167, %v217, 0.0
        %v222 = vsel %vm167, %v219, 0.0
        %v223 = vadd.f32 %v221, %v222
        %224 = vadd.xlane.f32.xlu0 %v223
        %v225 = vpop.xlane.xlu0 %224
        %v227 = vrot.slane %v172, 2
        %v230 = vrot.slane %v225, 2
        %vm232 = vcmask 7168
        %v233 = vsel %vm232, %v163, %v227
        %vm234 = vcmask 15360
        %v235 = vsel %vm234, %v233, %v203
        %vm236 = vcmask 23552
        %v237 = vsel %vm236, %v235, %v216
        %vm238 = vcmask 31744
        %v239 = vsel %vm238, %v237, %v230
        %vm240 = vcmask 39936
        %v241 = vsel %vm240, %v239, 0.0
        %vm242 = vcmask 58368
        %243 = vst.msk [vmem:[%s150] sm:$0x3] %vm242, %v241
        %s244 = sand.u32 %s68, 1
        %s245 = scalar_lea.sflag [#allocation4], %s244
        %s246 = sand.u32 %s68, 1
        %s247 = smul.addr %s246, 2
        %s248 = scalar_lea.vmem [#allocation5], %s247
        // Predicated region
        $region29: #{tpu_custom_call.1} parent=23 // pred_check
          %p249 = pneg %p78
        $region30: #{tpu_custom_call.1} parent=23 // pred_check_branch
          %251 = sbr.rel (%p249) target = $region32
        $region31: #{tpu_custom_call.1} parent=23 // pred_region
          %s252 = sadd.s32 %s22, %s23
          %s254 = ssub.s32 32, 32
          %255 = vsyncadd %s245, %s254
          %s256 = smul.addr %s252, 32
          %s257 = scalar_lea.hbm %s1, %s256
          %s259 = sshll.u32 %s248, 4
          %s260 = int_to_ptr.vmem [resolvable:$true] %s259
          %262 = dma.vmem_to_hbm [thread:$0]  %s260, 32, %s257, %s245
        $region32: #{tpu_custom_call.1} parent=23 // pred_fallthru
          _
      $region24: #{tpu_custom_call.1} parent=5 // pred_fallthru
        _
      %p263 = scmp.le.s32.totalorder 2, %s13
      // Predicated region
      $region33: #{tpu_custom_call.1} parent=5 // pred_check
        %p264 = pneg %p263
      $region34: #{tpu_custom_call.1} parent=5 // pred_check_branch
        %266 = sbr.rel (%p264) target = $region36
      $region35: #{tpu_custom_call.1} parent=5 // pred_region
        %s267 = ssub.s32 %s13, 2
        // Predicated region
        $region37: #{tpu_custom_call.1} parent=35 // pred_check
          %p268 = pneg %p84
        $region38: #{tpu_custom_call.1} parent=35 // pred_check_branch
          %270 = sbr.rel (%p268) target = $region40
        $region39: #{tpu_custom_call.1} parent=35 // pred_region
          %s271 = sand.u32 %s69, 1
          %s272 = scalar_lea.sflag [#allocation4], %s271
          %s273 = sand.u32 %s69, 1
          %s274 = smul.addr %s273, 2
          %s275 = scalar_lea.vmem [#allocation5], %s274
          %276 = dma.done %s272, 32
        $region40: #{tpu_custom_call.1} parent=35 // pred_fallthru
          _
      $region36: #{tpu_custom_call.1} parent=5 // pred_fallthru
        _
    $region6: #{tpu_custom_call.1} parent=1 // loop_footer
      %s17 = sadd.s32 1, %s13
    $region7: #{tpu_custom_call.1} parent=1 // loop_footer_branch
      %12 = sbr.rel target = $region3
    $region8: #{tpu_custom_call.1} parent=1 // loop_exit
      _
    %277 = vsyncpa [#allocation3], 1
    %s278 = scalar_lea.sflag [#allocation3], 1
    %279 = vsyncpa %s278, 1
    %280 = vsyncpa [#allocation4], 1
    %s281 = scalar_lea.sflag [#allocation4], 1
    %282 = vsyncpa %s281, 1

</llo_original>
